<compile_context>
chip_gen: v7x
topology: tpu7x:2x2x1
jax: 0.10.0
libtpu: 0.0.40
codegen_flags: <defaults>
</compile_context>

<pallas_src>
import jax
import jax.numpy as jnp
import numpy as np
from jax.experimental import pallas as pl
from jax.experimental.pallas import tpu as pltpu

C_PAD = 128  # lane-dense channel padding (requires C_in, C_out <= 128)


def _round_up(v, m):
    return (v + m - 1) // m * m


def _vmem_capacity_bytes():
    try:
        return int(pltpu.get_tpu_info().vmem_capacity_bytes)
    except Exception:
        return 64 << 20  # conservative default (v7x: 64 MiB per TensorCore)


def _plan_kernel1(n_pad, num_rel, c_pad, vmem_cap):
    """Row tile + vmem limit for the message-table precompute (kernel 1)."""
    budget = min(int(vmem_cap * 0.6), 64 << 20)

    def footprint(tm):
        return (2 * tm * c_pad * 4                        # x row tile (f32, double-buffered)
                + 2 * (num_rel + 1) * c_pad * c_pad * 4   # folded W_r's + root (resident)
                + 2 * tm * num_rel * c_pad * 2            # bf16 message-table output tile
                + 2 * tm * c_pad * 4)                     # f32 xroot output tile

    tm = 128
    for t in (1024, 512, 256, 128):
        if t <= n_pad and n_pad % t == 0 and footprint(t) <= budget:
            tm = t
            break
    limit = int(min(max(footprint(tm) + (8 << 20), 32 << 20), vmem_cap))
    return tm, limit


def _plan_kernel2(n_pad, c_pad, vmem_cap):
    """Dest-row tile + vmem limit for the relational aggregation (kernel 2)."""
    budget = min(int(vmem_cap * 0.7), 96 << 20)

    def footprint(tm):
        return (2 * tm * n_pad * 1          # int8 adj dest-row tile (double-buffered)
                + 2 * n_pad * c_pad * 2     # bf16 message slab for one relation (double-buffered)
                + 2 * tm * c_pad * 4        # f32 output / accumulator block
                + 2 * tm * c_pad * 4        # f32 xroot tile
                + 2 * tm * 128 * 4          # (tm, 1) inv_dest tile (lane-padded in VMEM)
                + tm * n_pad * 2)           # in-kernel int8 -> bf16 cast buffer

    candidates = [t for t in (2048, 1024, 512, 256, 128) if t <= n_pad and n_pad % t == 0]
    if not candidates:
        candidates = [n_pad]
    # Keep >= 2 dest tiles whenever possible so both TensorCores (v7x) get work.
    multi = [t for t in candidates if n_pad // t >= 2]
    if multi:
        candidates = multi
    tm = candidates[-1]
    for t in candidates:
        if footprint(t) <= budget:
            tm = t
            break
    limit = int(min(max(footprint(tm) + (8 << 20), 32 << 20), vmem_cap))
    return tm, limit


# ---------------------------------------------------------------------------
# Kernel 1: message-table precompute
#   msg[:, r*128:(r+1)*128] = x @ W_r   (bf16, fed to the MXU in kernel 2)
#   xroot                   = x @ root  (f32, added in the epilogue)
# ---------------------------------------------------------------------------
def _transform_kernel(x_ref, wrel_ref, root_ref, msg_ref, xroot_ref):
    x = x_ref[...]
    msg_ref[...] = jnp.dot(
        x, wrel_ref[...], preferred_element_type=jnp.float32
    ).astype(jnp.bfloat16)
    xroot_ref[...] = jnp.dot(x, root_ref[...], preferred_element_type=jnp.float32)


# ---------------------------------------------------------------------------
# Kernel 2: relational message passing + averaging + root epilogue
#   grid = (dest-row tiles ["parallel"], relations ["arbitrary" reduction])
#   The f32 output block is resident across the relation axis and doubles as
#   the accumulator (no scratch).
# ---------------------------------------------------------------------------
def _se_rgcn_kernel(a_ref, msg_ref, xroot_ref, inv_dest_ref, out_ref):
    r = pl.program_id(1)

    @pl.when(r == 0)
    def _():
        out_ref[...] = jnp.zeros_like(out_ref)

    # int8 edge counts -> bf16 (exact for small counts) for the MXU; f32 accumulate.
    # scatter-add over relation-r edges == dense adjacency matmul for this dest tile.
    a = a_ref[0].astype(jnp.bfloat16)
    out_ref[...] += jnp.dot(a, msg_ref[...], preferred_element_type=jnp.float32)

    @pl.when(r == pl.num_programs(1) - 1)
    def _():
        # f32 epilogue: multiply by precomputed reciprocal of dest, add self-loop term.
        out_ref[...] = out_ref[...] * inv_dest_ref[...] + xroot_ref[...]


# ---------------------------------------------------------------------------
# Wrapper
# ---------------------------------------------------------------------------
def se_rgcn_pallas(x, adj, att, basis, root, dest):
    """
    x     : (N, C_in)        float32 node features ('drug')
    adj   : (R, N, N)        dense per-relation adjacency, adj[r, dst, src] = edge count (<= 127)
    att   : (R, B)           basis-decomposition coefficients
    basis : (B, C_in, C_out) basis weights
    root  : (C_in, C_out)    self-loop weight
    dest  : (N, 1)           per-destination divisor (dest_dict), must be > 0
    """
    N, C_in = x.shape
    R, B = att.shape
    C_out = root.shape[1]
    assert C_in <= C_PAD and C_out <= C_PAD, "se_rgcn_pallas assumes C_in, C_out <= 128"
    c_pad = C_PAD
    n_pad = _round_up(max(N, 128), 128)
    vmem_cap = _vmem_capacity_bytes()
    tm1, limit1 = _plan_kernel1(n_pad, R, c_pad, vmem_cap)
    tm2, limit2 = _plan_kernel2(n_pad, c_pad, vmem_cap)

    # ---- padding / repacking (plain-JAX glue) ----
    x_pad = jnp.zeros((n_pad, c_pad), jnp.float32).at[:N, :C_in].set(x)
    # int8 adjacency built directly into an int8 zeros buffer (no padded f32 temp).
    # Edge counts must be <= 127 (exact in int8 and, after the in-kernel cast, in bf16).
    adj_i8 = (
        jnp.zeros((R, n_pad, n_pad), jnp.int8)
        .at[:, :N, :N]
        .set(jnp.rint(adj).astype(jnp.int8))
    )
    # Fold att into the per-relation weights: W_r = sum_b att[r, b] * basis[b].
    w_rel = jnp.einsum("rb,bio->rio", att, basis)                       # (R, C_in, C_out)
    w_rel_pad = jnp.zeros((R, c_pad, c_pad), jnp.float32).at[:, :C_in, :C_out].set(w_rel)
    w_rel_cat = w_rel_pad.transpose(1, 0, 2).reshape(c_pad, R * c_pad)  # [W_0 | .. | W_{R-1}]
    root_pad = jnp.zeros((c_pad, c_pad), jnp.float32).at[:C_in, :C_out].set(root)
    # NOTE: dest must be > 0 (the reference module divides by dest_dict directly).
    inv_dest = jnp.zeros((n_pad, 1), jnp.float32).at[:N, :].set(1.0 / dest)

    # --- kernel 1: bf16 message table + f32 xroot ---
    msg, xroot = pl.pallas_call(
        _transform_kernel,
        out_shape=(
            jax.ShapeDtypeStruct((n_pad, R * c_pad), jnp.bfloat16),
            jax.ShapeDtypeStruct((n_pad, c_pad), jnp.float32),
        ),
        grid=(n_pad // tm1,),
        in_specs=[
            pl.BlockSpec((tm1, c_pad), lambda i: (i, 0)),
            pl.BlockSpec((c_pad, R * c_pad), lambda i: (0, 0)),
            pl.BlockSpec((c_pad, c_pad), lambda i: (0, 0)),
        ],
        out_specs=(
            pl.BlockSpec((tm1, R * c_pad), lambda i: (i, 0)),
            pl.BlockSpec((tm1, c_pad), lambda i: (i, 0)),
        ),
        compiler_params=pltpu.CompilerParams(
            dimension_semantics=("parallel",),
            vmem_limit_bytes=limit1,
        ),
    )(x_pad, w_rel_cat, root_pad)

    # --- kernel 2: tiled relational aggregation + averaging + root epilogue ---
    out_pad = pl.pallas_call(
        _se_rgcn_kernel,
        out_shape=jax.ShapeDtypeStruct((n_pad, c_pad), jnp.float32),
        grid=(n_pad // tm2, R),
        in_specs=[
            pl.BlockSpec((1, tm2, n_pad), lambda i, r: (r, i, 0)),   # adj[r] dest-row tile (int8)
            pl.BlockSpec((n_pad, c_pad), lambda i, r: (0, r)),       # bf16 message slab, relation r
            pl.BlockSpec((tm2, c_pad), lambda i, r: (i, 0)),         # x @ root, dest tile
            pl.BlockSpec((tm2, 1), lambda i, r: (i, 0)),             # 1 / dest, dest tile
        ],
        out_specs=pl.BlockSpec((tm2, c_pad), lambda i, r: (i, 0)),   # resident across r (accumulator)
        compiler_params=pltpu.CompilerParams(
            dimension_semantics=("parallel", "arbitrary"),
            vmem_limit_bytes=limit2,
        ),
    )(adj_i8, msg, xroot, inv_dest)

    return out_pad[:N, :C_out]


# ---------------------------------------------------------------------------
# Plain-JAX reference (exact f32 semantics, for verification)
# ---------------------------------------------------------------------------
def se_rgcn_reference(x, adj, att, basis, root, dest):
    R, B = att.shape
    C_in, C_out = root.shape
    w = (att @ basis.reshape(B, -1)).reshape(R, C_in, C_out)
    out = jnp.zeros((x.shape[0], C_out), jnp.float32)
    for r in range(R):
        out = out + adj[r] @ (x @ w[r])
    return out / dest + x @ root


if __name__ == "__main__":
    # Small synthetic problem consistent with the module's forward.
    N = 16            # number of 'drug' nodes
    C_in = 8          # in_channels
    C_out = 8         # out_channels
    R = 3             # num_relations (side_effect_0..2)
    B = 2             # num_bases
    E = 24            # edges per relation

    key = jax.random.PRNGKey(0)
    k_x, k_att, k_basis, k_root, k_edges = jax.random.split(key, 5)

    # Node features x_dict['drug']
    x = jax.random.normal(k_x, (N, C_in), dtype=jnp.float32)

    # Parameters, matching reset_parameters (after_relu=False, bias=False)
    att = (1.0 / np.sqrt(B)) * jax.random.normal(k_att, (R, B), dtype=jnp.float32)
    basis = (1.0 / np.sqrt(C_in)) * jax.random.normal(
        k_basis, (B, C_in, C_out), dtype=jnp.float32
    )
    root = (1.0 / np.sqrt(C_in)) * jax.random.normal(
        k_root, (C_in, C_out), dtype=jnp.float32
    )

    # Synthetic edge_index_dict: one (2, E) edge list per 'side_effect_r' relation.
    edge_keys = jax.random.split(k_edges, R)
    adj_np = np.zeros((R, N, N), dtype=np.float32)
    total_in_deg = np.zeros((N,), dtype=np.float32)
    for r in range(R):
        ei = np.array(jax.random.randint(edge_keys[r], (2, E), 0, N), dtype=np.int64)
        src, dst = ei[0], ei[1]
        np.add.at(adj_np, (np.full(E, r), dst, src), 1.0)   # adj[r, dst, src] += 1
        np.add.at(total_in_deg, dst, 1.0)
    adj = jnp.asarray(adj_np)

    # dest_dict: per-destination incoming-edge count (clamped >= 1 before inverting), shape (N, 1)
    dest = jnp.asarray(np.maximum(total_in_deg, 1.0).reshape(N, 1))

    # --- Pallas forward ---
    out = jax.block_until_ready(se_rgcn_pallas(x, adj, att, basis, root, dest))

    # --- verify against exact f32 reference.  Tolerance accounts for bf16 message
    #     precision (adjacency counts themselves are exact in int8/bf16). ---
    ref = jax.block_until_ready(se_rgcn_reference(x, adj, att, basis, root, dest))
    np.testing.assert_allclose(np.asarray(out), np.asarray(ref), rtol=3e-2, atol=3e-2)

    print("KERNEL_OK")
</pallas_src>

<mosaic_0001>
module attributes {stable_mosaic.version = 11 : i64} {
  func.func @_transform_kernel(%arg0: i32, %arg1: memref<128x128xf32, #tpu.memory_space<vmem>>, %arg2: memref<128x384xf32, #tpu.memory_space<vmem>>, %arg3: memref<128x128xf32, #tpu.memory_space<vmem>>, %arg4: memref<128x384xbf16, #tpu.memory_space<vmem>>, %arg5: memref<128x128xf32, #tpu.memory_space<vmem>>) attributes {dimension_semantics = [#tpu.dimension_semantics<parallel>], iteration_bounds = array<i64: 1>, scalar_prefetch = 0 : i64, scratch_operands = 0 : i64, tpu.core_type = #tpu.core_type<tc>, window_params = [{transform_indices = @transform_0, window_bounds = array<i64: 128, 128>}, {pipeline_mode = #tpu.pipeline_mode<synchronous>, transform_indices = @transform_1, window_bounds = array<i64: 128, 384>}, {pipeline_mode = #tpu.pipeline_mode<synchronous>, transform_indices = @transform_2, window_bounds = array<i64: 128, 128>}, {transform_indices = @transform_3, window_bounds = array<i64: 128, 384>}, {transform_indices = @transform_4, window_bounds = array<i64: 128, 128>}]} {
    %c0 = arith.constant 0 : index
    %c0_0 = arith.constant 0 : index
    %0 = vector.load %arg1[%c0, %c0_0] : memref<128x128xf32, #tpu.memory_space<vmem>>, vector<128x128xf32>
    %c0_1 = arith.constant 0 : index
    %c0_2 = arith.constant 0 : index
    %1 = vector.load %arg2[%c0_1, %c0_2] : memref<128x384xf32, #tpu.memory_space<vmem>>, vector<128x384xf32>
    %cst = arith.constant dense<0.000000e+00> : vector<128x384xf32>
    %2 = tpu.matmul %0, %1, %cst {dimension_numbers = #tpu.dot_dimension_numbers<[1], [0], [0], [1], [0, 0, 1, 1], [], []>} : vector<128x128xf32>, vector<128x384xf32>, vector<128x384xf32> -> vector<128x384xf32>
    %3 = arith.truncf %2 : vector<128x384xf32> to vector<128x384xbf16>
    %c0_3 = arith.constant 0 : index
    %c0_4 = arith.constant 0 : index
    %4 = vector.load %arg4[%c0_3, %c0_4] : memref<128x384xbf16, #tpu.memory_space<vmem>>, vector<128x384xbf16>
    tpu.vector_store %arg4[%c0_3, %c0_4], %3 {strides = array<i32>} : memref<128x384xbf16, #tpu.memory_space<vmem>>, vector<128x384xbf16>,
    %c0_5 = arith.constant 0 : index
    %c0_6 = arith.constant 0 : index
    %5 = vector.load %arg3[%c0_5, %c0_6] : memref<128x128xf32, #tpu.memory_space<vmem>>, vector<128x128xf32>
    %cst_7 = arith.constant dense<0.000000e+00> : vector<128x128xf32>
    %6 = tpu.matmul %0, %5, %cst_7 {dimension_numbers = #tpu.dot_dimension_numbers<[1], [0], [0], [1], [0, 0, 1, 1], [], []>} : vector<128x128xf32>, vector<128x128xf32>, vector<128x128xf32> -> vector<128x128xf32>
    %c0_8 = arith.constant 0 : index
    %c0_9 = arith.constant 0 : index
    %7 = vector.load %arg5[%c0_8, %c0_9] : memref<128x128xf32, #tpu.memory_space<vmem>>, vector<128x128xf32>
    tpu.vector_store %arg5[%c0_8, %c0_9], %6 {strides = array<i32>} : memref<128x128xf32, #tpu.memory_space<vmem>>, vector<128x128xf32>,
    return
  }
  func.func @transform_0(%arg0: i32) -> (i32, i32) {
    %c0_i32 = arith.constant 0 : i32
    %c0_i32_0 = arith.constant 0 : i32
    return %arg0, %c0_i32 : i32, i32
  }
  func.func @transform_1(%arg0: i32) -> (i32, i32) {
    %c0_i32 = arith.constant 0 : i32
    %c0_i32_0 = arith.constant 0 : i32
    %c0_i32_1 = arith.constant 0 : i32
    return %c0_i32, %c0_i32_0 : i32, i32
  }
  func.func @transform_2(%arg0: i32) -> (i32, i32) {
    %c0_i32 = arith.constant 0 : i32
    %c0_i32_0 = arith.constant 0 : i32
    %c0_i32_1 = arith.constant 0 : i32
    return %c0_i32, %c0_i32_0 : i32, i32
  }
  func.func @transform_3(%arg0: i32) -> (i32, i32) {
    %c0_i32 = arith.constant 0 : i32
    %c0_i32_0 = arith.constant 0 : i32
    return %arg0, %c0_i32 : i32, i32
  }
  func.func @transform_4(%arg0: i32) -> (i32, i32) {
    %c0_i32 = arith.constant 0 : i32
    %c0_i32_0 = arith.constant 0 : i32
    return %arg0, %c0_i32 : i32, i32
  }
}

</mosaic_0001>

<llo_original>
// kernel: tpu_custom_call.1
$region0: #{tpu_custom_call.1}
  #allocation0 [shape = 'u32[]', space=smem, size = 0x4, offset = 0x4, fixed_abs, tag = 'smem constant byte address 0x4 - core index']
  #allocation1 [shape = 'u32[144,128]{1,0:T(1,128)}', space=vmem, size = 0x12000, scoped, tag = 'internal scratch']
  %s0 = inlined_call_operand.hbm [shape: f32[128,128], index: 0, kind: input, shape index: {}]
  %s1 = inlined_call_operand.hbm [shape: f32[128,384], index: 1, kind: input, shape index: {}]
  %s2 = inlined_call_operand.hbm [shape: f32[128,128], index: 2, kind: input, shape index: {}]
  %s3 = inlined_call_operand.hbm [shape: bf16[128,384], index: 3, kind: output, shape index: {0}]
  %s4 = inlined_call_operand.hbm [shape: f32[128,128], index: 4, kind: output, shape index: {1}]
  %5 = xla_tuple %s3, %s4
  %s6 = sld [smem:[#allocation0]]
  $region42: #{tpu_custom_call.1} parent=0
    _
  %s8 = ssub.s32 1, %s6
  %s9 = scalar_select 0, %s8, %s6
  $region1: #{tpu_custom_call.1} parent=0
    #allocation2 [shape = 'u8[65536]{0}', space=vmem, size = 0x10000, scoped, tag = 'input window, operand 0, single buffered']
    #allocation3 [shape = 's32[1]{0}', space=sflag, size = 0x4, scoped, tag = 'scoped memory for tpu_custom_call.1']
    #allocation4 [shape = 's32[1]{0}', space=sflag, size = 0x4, scoped, tag = 'scoped memory for tpu_custom_call.1']
    #allocation5 [shape = 'u8[196608]{0}', space=vmem, size = 0x30000, scoped, tag = 'input window, operand 1, single buffered']
    #allocation6 [shape = 's32[1]{0}', space=sflag, size = 0x4, scoped, tag = 'scoped memory for tpu_custom_call.1']
    #allocation7 [shape = 'u8[65536]{0}', space=vmem, size = 0x10000, scoped, tag = 'input window, operand 2, single buffered']
    #allocation8 [shape = 'u8[98304]{0}', space=vmem, size = 0x18000, scoped, tag = 'output window, operand 0, single buffered']
    #allocation9 [shape = 'u8[65536]{0}', space=vmem, size = 0x10000, scoped, tag = 'output window, operand 1, single buffered']
    #allocation10 [shape = 's32[1]{0}', space=sflag, size = 0x4, scoped, tag = 'scoped memory for tpu_custom_call.1']
    %10 = vsyncpa [#allocation3], 0
    %11 = vsyncpa [#allocation6], 0
    %12 = vsyncpa [#allocation4], 0
    %13 = vsyncpa [#allocation10], 0
    // Predicated region
    $region2: #{tpu_custom_call.1} parent=1 // pred_check
      _
    $region3: #{tpu_custom_call.1} parent=1 // pred_check_branch
      %15 = sbr.rel (0) target = $region5
    $region4: #{tpu_custom_call.1} parent=1 // pred_region
      %s17 = ssub.s32 2048, 2048
      %18 = vsyncadd [#allocation3], %s17
      %s19 = sshll.u32 [#allocation2], 4
      %s20 = int_to_ptr.vmem [resolvable:$true] %s19
      %25 = dma.hbm_to_vmem [thread:$0]  %s0, 2048, %s20, [#allocation3], 128, 128, 8
    $region5: #{tpu_custom_call.1} parent=1 // pred_fallthru
      _
    // Predicated region
    $region6: #{tpu_custom_call.1} parent=1 // pred_check
      _
    $region7: #{tpu_custom_call.1} parent=1 // pred_check_branch
      %27 = sbr.rel (0) target = $region9
    $region8: #{tpu_custom_call.1} parent=1 // pred_region
      %s29 = ssub.s32 6144, 6144
      %30 = vsyncadd [#allocation6], %s29
      %s31 = sshll.u32 [#allocation5], 4
      %s32 = int_to_ptr.vmem [resolvable:$true] %s31
      %37 = dma.hbm_to_vmem [thread:$0]  %s1, 6144, %s32, [#allocation6], 384, 384, 24
    $region9: #{tpu_custom_call.1} parent=1 // pred_fallthru
      _
    // Predicated region
    $region10: #{tpu_custom_call.1} parent=1 // pred_check
      _
    $region11: #{tpu_custom_call.1} parent=1 // pred_check_branch
      %39 = sbr.rel (0) target = $region13
    $region12: #{tpu_custom_call.1} parent=1 // pred_region
      %s41 = ssub.s32 2048, 2048
      %42 = vsyncadd [#allocation6], %s41
      %s43 = sshll.u32 [#allocation7], 4
      %s44 = int_to_ptr.vmem [resolvable:$true] %s43
      %49 = dma.hbm_to_vmem [thread:$0]  %s2, 2048, %s44, [#allocation6], 128, 128, 8
    $region13: #{tpu_custom_call.1} parent=1 // pred_fallthru
      _
    // Predicated region
    $region14: #{tpu_custom_call.1} parent=1 // pred_check
      _
    $region15: #{tpu_custom_call.1} parent=1 // pred_check_branch
      %51 = sbr.rel (0) target = $region17
    $region16: #{tpu_custom_call.1} parent=1 // pred_region
      %52 = dma.done [#allocation3], 2048
    $region17: #{tpu_custom_call.1} parent=1 // pred_fallthru
      _
    // Predicated region
    $region18: #{tpu_custom_call.1} parent=1 // pred_check
      _
    $region19: #{tpu_custom_call.1} parent=1 // pred_check_branch
      %54 = sbr.rel (0) target = $region21
    $region20: #{tpu_custom_call.1} parent=1 // pred_region
      %55 = dma.done [#allocation6], 6144
    $region21: #{tpu_custom_call.1} parent=1 // pred_fallthru
      _
    // Predicated region
    $region22: #{tpu_custom_call.1} parent=1 // pred_check
      _
    $region23: #{tpu_custom_call.1} parent=1 // pred_check_branch
      %57 = sbr.rel (0) target = $region25
    $region24: #{tpu_custom_call.1} parent=1 // pred_region
      %58 = dma.done [#allocation6], 2048
    $region25: #{tpu_custom_call.1} parent=1 // pred_fallthru
      _
    %v59 = vld [vmem:[#allocation2] sm:$0xff]
    %v60 = vld [vmem:[#allocation2 + $0x8] sm:$0xff]
    %v61 = vld [vmem:[#allocation2 + $0x10] sm:$0xff]
    %v62 = vld [vmem:[#allocation2 + $0x18] sm:$0xff]
    %v63 = vld [vmem:[#allocation2 + $0x20] sm:$0xff]
    %v64 = vld [vmem:[#allocation2 + $0x28] sm:$0xff]
    %v65 = vld [vmem:[#allocation2 + $0x30] sm:$0xff]
    %v66 = vld [vmem:[#allocation2 + $0x38] sm:$0xff]
    %v67 = vld [vmem:[#allocation2 + $0x40] sm:$0xff]
    %v68 = vld [vmem:[#allocation2 + $0x48] sm:$0xff]
    %v69 = vld [vmem:[#allocation2 + $0x50] sm:$0xff]
    %v70 = vld [vmem:[#allocation2 + $0x58] sm:$0xff]
    %v71 = vld [vmem:[#allocation2 + $0x60] sm:$0xff]
    %v72 = vld [vmem:[#allocation2 + $0x68] sm:$0xff]
    %v73 = vld [vmem:[#allocation2 + $0x70] sm:$0xff]
    %v74 = vld [vmem:[#allocation2 + $0x78] sm:$0xff]
    %v75 = vld [vmem:[#allocation5] sm:$0xff]
    %v76 = vld [vmem:[#allocation5 + $0x8] sm:$0xff]
    %v77 = vld [vmem:[#allocation5 + $0x10] sm:$0xff]
    %v78 = vld [vmem:[#allocation5 + $0x18] sm:$0xff]
    %v79 = vld [vmem:[#allocation5 + $0x20] sm:$0xff]
    %v80 = vld [vmem:[#allocation5 + $0x28] sm:$0xff]
    %v81 = vld [vmem:[#allocation5 + $0x30] sm:$0xff]
    %v82 = vld [vmem:[#allocation5 + $0x38] sm:$0xff]
    %v83 = vld [vmem:[#allocation5 + $0x40] sm:$0xff]
    %v84 = vld [vmem:[#allocation5 + $0x48] sm:$0xff]
    %v85 = vld [vmem:[#allocation5 + $0x50] sm:$0xff]
    %v86 = vld [vmem:[#allocation5 + $0x58] sm:$0xff]
    %v87 = vld [vmem:[#allocation5 + $0x60] sm:$0xff]
    %v88 = vld [vmem:[#allocation5 + $0x68] sm:$0xff]
    %v89 = vld [vmem:[#allocation5 + $0x70] sm:$0xff]
    %v90 = vld [vmem:[#allocation5 + $0x78] sm:$0xff]
    %v91 = vld [vmem:[#allocation5 + $0x80] sm:$0xff]
    %v92 = vld [vmem:[#allocation5 + $0x88] sm:$0xff]
    %v93 = vld [vmem:[#allocation5 + $0x90] sm:$0xff]
    %v94 = vld [vmem:[#allocation5 + $0x98] sm:$0xff]
    %v95 = vld [vmem:[#allocation5 + $0xa0] sm:$0xff]
    %v96 = vld [vmem:[#allocation5 + $0xa8] sm:$0xff]
    %v97 = vld [vmem:[#allocation5 + $0xb0] sm:$0xff]
    %v98 = vld [vmem:[#allocation5 + $0xb8] sm:$0xff]
    %v99 = vld [vmem:[#allocation5 + $0xc0] sm:$0xff]
    %v100 = vld [vmem:[#allocation5 + $0xc8] sm:$0xff]
    %v101 = vld [vmem:[#allocation5 + $0xd0] sm:$0xff]
    %v102 = vld [vmem:[#allocation5 + $0xd8] sm:$0xff]
    %v103 = vld [vmem:[#allocation5 + $0xe0] sm:$0xff]
    %v104 = vld [vmem:[#allocation5 + $0xe8] sm:$0xff]
    %v105 = vld [vmem:[#allocation5 + $0xf0] sm:$0xff]
    %v106 = vld [vmem:[#allocation5 + $0xf8] sm:$0xff]
    %v107 = vld [vmem:[#allocation5 + $0x100] sm:$0xff]
    %v108 = vld [vmem:[#allocation5 + $0x108] sm:$0xff]
    %v109 = vld [vmem:[#allocation5 + $0x110] sm:$0xff]
    %v110 = vld [vmem:[#allocation5 + $0x118] sm:$0xff]
    %v111 = vld [vmem:[#allocation5 + $0x120] sm:$0xff]
    %v112 = vld [vmem:[#allocation5 + $0x128] sm:$0xff]
    %v113 = vld [vmem:[#allocation5 + $0x130] sm:$0xff]
    %v114 = vld [vmem:[#allocation5 + $0x138] sm:$0xff]
    %v115 = vld [vmem:[#allocation5 + $0x140] sm:$0xff]
    %v116 = vld [vmem:[#allocation5 + $0x148] sm:$0xff]
    %v117 = vld [vmem:[#allocation5 + $0x150] sm:$0xff]
    %v118 = vld [vmem:[#allocation5 + $0x158] sm:$0xff]
    %v119 = vld [vmem:[#allocation5 + $0x160] sm:$0xff]
    %v120 = vld [vmem:[#allocation5 + $0x168] sm:$0xff]
    %v121 = vld [vmem:[#allocation5 + $0x170] sm:$0xff]
    %v122 = vld [vmem:[#allocation5 + $0x178] sm:$0xff]
    %123 = vmatprep.subr.mxu0 %v76
    %124 = vmatpush1.msra.mxu0 %v75
    %125 = vmatprep.subr.mxu0 %v79
    %126 = vmatpush1.msra.mxu0 %v78
    %127 = vmatprep.subr.mxu0 %v82
    %128 = vmatpush1.msra.mxu0 %v81
    %129 = vmatprep.subr.mxu0 %v85
    %130 = vmatpush1.msra.mxu0 %v84
    %131 = vmatprep.subr.mxu0 %v88
    %132 = vmatpush1.msra.mxu0 %v87
    %133 = vmatprep.subr.mxu0 %v91
    %134 = vmatpush1.msra.mxu0 %v90
    %135 = vmatprep.subr.mxu0 %v94
    %136 = vmatpush1.msra.mxu0 %v93
    %137 = vmatprep.subr.mxu0 %v97
    %138 = vmatpush1.msra.mxu0 %v96
    %139 = vmatprep.subr.mxu0 %v100
    %140 = vmatpush1.msra.mxu0 %v99
    %141 = vmatprep.subr.mxu0 %v103
    %142 = vmatpush1.msra.mxu0 %v102
    %143 = vmatprep.subr.mxu0 %v106
    %144 = vmatpush1.msra.mxu0 %v105
    %145 = vmatprep.subr.mxu0 %v109
    %146 = vmatpush1.msra.mxu0 %v108
    %147 = vmatprep.subr.mxu0 %v112
    %148 = vmatpush1.msra.mxu0 %v111
    %149 = vmatprep.subr.mxu0 %v115
    %150 = vmatpush1.msra.mxu0 %v114
    %151 = vmatprep.subr.mxu0 %v118
    %152 = vmatpush1.msra.mxu0 %v117
    %153 = vmatprep.subr.mxu0 %v121
    %154 = vmatpush1.msra.mxu0 %v120
    %155 = vmatprep.subr.mxu0 0.0
    %156 = vmatpush1.msra.mxu0 0.0
    %157 = vmatprep.subr.mxu0 0.0
    %158 = vmatpush1.msra.mxu0 0.0
    %159 = vmatprep.subr.mxu0 0.0
    %160 = vmatpush1.msra.mxu0 0.0
    %161 = vmatprep.subr.mxu0 0.0
    %162 = vmatpush1.msra.mxu0 0.0
    %163 = vmatprep.subr.mxu0 0.0
    %164 = vmatpush1.msra.mxu0 0.0
    %165 = vmatprep.subr.mxu0 0.0
    %166 = vmatpush1.msra.mxu0 0.0
    %167 = vmatprep.subr.mxu0 0.0
    %168 = vmatpush1.msra.mxu0 0.0
    %169 = vmatprep.subr.mxu0 0.0
    %170 = vmatpush1.msra.mxu0 0.0
    %171 = vmatprep.subr.mxu0 0.0
    %172 = vmatpush1.msra.mxu0 0.0
    %173 = vmatprep.subr.mxu0 0.0
    %174 = vmatpush1.msra.mxu0 0.0
    %175 = vmatprep.subr.mxu0 0.0
    %176 = vmatpush1.msra.mxu0 0.0
    %177 = vmatprep.subr.mxu0 0.0
    %178 = vmatpush1.msra.mxu0 0.0
    %179 = vmatprep.subr.mxu0 0.0
    %180 = vmatpush1.msra.mxu0 0.0
    %181 = vmatprep.subr.mxu0 0.0
    %182 = vmatpush1.msra.mxu0 0.0
    %183 = vmatprep.subr.mxu0 0.0
    %184 = vmatpush1.msra.mxu0 0.0
    %185 = vmatprep.subr.mxu0 0.0
    %186 = vmatpush1.msra.mxu0 0.0
    %187 = vmatprep.mubr.f32.mxu0 0.0
    %188 = vmatmul.mubr.f32.gmra.mrb[0].mxu0 %v59
    %v189 = vpop.f32.mrb[0].mxu0
    %v190 = vadd.f32 0.0, %v189
    %v191 = vpop.f32.mrb[0].mxu0
    %v192 = vadd.f32 0.0, %v191
    %193 = vmatprep.mubr.f32.mxu0 0.0
    %194 = vmatmul.mubr.f32.gmra.mrb[0].mxu0 %v60
    %v195 = vpop.f32.mrb[0].mxu0
    %v196 = vadd.f32 0.0, %v195
    %v197 = vpop.f32.mrb[0].mxu0
    %v198 = vadd.f32 0.0, %v197
    %199 = vmatprep.mubr.f32.mxu0 0.0
    %200 = vmatmul.mubr.f32.gmra.mrb[0].mxu0 %v61
    %v201 = vpop.f32.mrb[0].mxu0
    %v202 = vadd.f32 0.0, %v201
    %v203 = vpop.f32.mrb[0].mxu0
    %v204 = vadd.f32 0.0, %v203
    %205 = vmatprep.mubr.f32.mxu0 0.0
    %206 = vmatmul.mubr.f32.gmra.mrb[0].mxu0 %v62
    %v207 = vpop.f32.mrb[0].mxu0
    %v208 = vadd.f32 0.0, %v207
    %v209 = vpop.f32.mrb[0].mxu0
    %v210 = vadd.f32 0.0, %v209
    %211 = vmatprep.mubr.f32.mxu0 0.0
    %212 = vmatmul.mubr.f32.gmra.mrb[0].mxu0 %v63
    %v213 = vpop.f32.mrb[0].mxu0
    %v214 = vadd.f32 0.0, %v213
    %v215 = vpop.f32.mrb[0].mxu0
    %v216 = vadd.f32 0.0, %v215
    %217 = vmatprep.mubr.f32.mxu0 0.0
    %218 = vmatmul.mubr.f32.gmra.mrb[0].mxu0 %v64
    %v219 = vpop.f32.mrb[0].mxu0
    %v220 = vadd.f32 0.0, %v219
    %v221 = vpop.f32.mrb[0].mxu0
    %v222 = vadd.f32 0.0, %v221
    %223 = vmatprep.mubr.f32.mxu0 0.0
    %224 = vmatmul.mubr.f32.gmra.mrb[0].mxu0 %v65
    %v225 = vpop.f32.mrb[0].mxu0
    %v226 = vadd.f32 0.0, %v225
    %v227 = vpop.f32.mrb[0].mxu0
    %v228 = vadd.f32 0.0, %v227
    %229 = vmatprep.mubr.f32.mxu0 0.0
    %230 = vmatmul.mubr.f32.gmra.mrb[0].mxu0 %v66
    %v231 = vpop.f32.mrb[0].mxu0
    %v232 = vadd.f32 0.0, %v231
    %v233 = vpop.f32.mrb[0].mxu0
    %v234 = vadd.f32 0.0, %v233
    %235 = vmatprep.mubr.f32.mxu0 0.0
    %236 = vmatmul.mubr.f32.gmra.mrb[0].mxu0 %v67
    %v237 = vpop.f32.mrb[0].mxu0
    %v238 = vadd.f32 0.0, %v237
    %v239 = vpop.f32.mrb[0].mxu0
    %v240 = vadd.f32 0.0, %v239
    %241 = vmatprep.mubr.f32.mxu0 0.0
    %242 = vmatmul.mubr.f32.gmra.mrb[0].mxu0 %v68
    %v243 = vpop.f32.mrb[0].mxu0
    %v244 = vadd.f32 0.0, %v243
    %v245 = vpop.f32.mrb[0].mxu0
    %v246 = vadd.f32 0.0, %v245
    %247 = vmatprep.mubr.f32.mxu0 0.0
    %248 = vmatmul.mubr.f32.gmra.mrb[0].mxu0 %v69
    %v249 = vpop.f32.mrb[0].mxu0
    %v250 = vadd.f32 0.0, %v249
    %v251 = vpop.f32.mrb[0].mxu0
    %v252 = vadd.f32 0.0, %v251
    %253 = vmatprep.mubr.f32.mxu0 0.0
    %254 = vmatmul.mubr.f32.gmra.mrb[0].mxu0 %v70
    %v255 = vpop.f32.mrb[0].mxu0
    %v256 = vadd.f32 0.0, %v255
    %v257 = vpop.f32.mrb[0].mxu0
    %v258 = vadd.f32 0.0, %v257
    %259 = vmatprep.mubr.f32.mxu0 0.0
    %260 = vmatmul.mubr.f32.gmra.mrb[0].mxu0 %v71
    %v261 = vpop.f32.mrb[0].mxu0
    %v262 = vadd.f32 0.0, %v261
    %v263 = vpop.f32.mrb[0].mxu0
    %v264 = vadd.f32 0.0, %v263
    %265 = vmatprep.mubr.f32.mxu0 0.0
    %266 = vmatmul.mubr.f32.gmra.mrb[0].mxu0 %v72
    %v267 = vpop.f32.mrb[0].mxu0
    %v268 = vadd.f32 0.0, %v267
    %v269 = vpop.f32.mrb[0].mxu0
    %v270 = vadd.f32 0.0, %v269
    %271 = vmatprep.mubr.f32.mxu0 0.0
    %272 = vmatmul.mubr.f32.gmra.mrb[0].mxu0 %v73
    %v273 = vpop.f32.mrb[0].mxu0
    %v274 = vadd.f32 0.0, %v273
    %v275 = vpop.f32.mrb[0].mxu0
    %v276 = vadd.f32 0.0, %v275
    %277 = vmatprep.mubr.f32.mxu0 0.0
    %278 = vmatmul.mubr.f32.gmra.mrb[0].mxu0 %v74
    %v279 = vpop.f32.mrb[0].mxu0
    %v280 = vadd.f32 0.0, %v279
    %v281 = vpop.f32.mrb[0].mxu0
    %v282 = vadd.f32 0.0, %v281
    %283 = vdwg.mxu0
    %284 = vmatprep.subr.mxu0 0.0
    %285 = vmatpush1.msra.mxu0 %v77
    %286 = vmatprep.subr.mxu0 0.0
    %287 = vmatpush1.msra.mxu0 %v80
    %288 = vmatprep.subr.mxu0 0.0
    %289 = vmatpush1.msra.mxu0 %v83
    %290 = vmatprep.subr.mxu0 0.0
    %291 = vmatpush1.msra.mxu0 %v86
    %292 = vmatprep.subr.mxu0 0.0
    %293 = vmatpush1.msra.mxu0 %v89
    %294 = vmatprep.subr.mxu0 0.0
    %295 = vmatpush1.msra.mxu0 %v92
    %296 = vmatprep.subr.mxu0 0.0
    %297 = vmatpush1.msra.mxu0 %v95
    %298 = vmatprep.subr.mxu0 0.0
    %299 = vmatpush1.msra.mxu0 %v98
    %300 = vmatprep.subr.mxu0 0.0
    %301 = vmatpush1.msra.mxu0 %v101
    %302 = vmatprep.subr.mxu0 0.0
    %303 = vmatpush1.msra.mxu0 %v104
    %304 = vmatprep.subr.mxu0 0.0
    %305 = vmatpush1.msra.mxu0 %v107
    %306 = vmatprep.subr.mxu0 0.0
    %307 = vmatpush1.msra.mxu0 %v110
    %308 = vmatprep.subr.mxu0 0.0
    %309 = vmatpush1.msra.mxu0 %v113
    %310 = vmatprep.subr.mxu0 0.0
    %311 = vmatpush1.msra.mxu0 %v116
    %312 = vmatprep.subr.mxu0 0.0
    %313 = vmatpush1.msra.mxu0 %v119
    %314 = vmatprep.subr.mxu0 0.0
    %315 = vmatpush1.msra.mxu0 %v122
    %316 = vmatprep.subr.mxu0 0.0
    %317 = vmatpush1.msra.mxu0 0.0
    %318 = vmatprep.subr.mxu0 0.0
    %319 = vmatpush1.msra.mxu0 0.0
    %320 = vmatprep.subr.mxu0 0.0
    %321 = vmatpush1.msra.mxu0 0.0
    %322 = vmatprep.subr.mxu0 0.0
    %323 = vmatpush1.msra.mxu0 0.0
    %324 = vmatprep.subr.mxu0 0.0
    %325 = vmatpush1.msra.mxu0 0.0
    %326 = vmatprep.subr.mxu0 0.0
    %327 = vmatpush1.msra.mxu0 0.0
    %328 = vmatprep.subr.mxu0 0.0
    %329 = vmatpush1.msra.mxu0 0.0
    %330 = vmatprep.subr.mxu0 0.0
    %331 = vmatpush1.msra.mxu0 0.0
    %332 = vmatprep.subr.mxu0 0.0
    %333 = vmatpush1.msra.mxu0 0.0
    %334 = vmatprep.subr.mxu0 0.0
    %335 = vmatpush1.msra.mxu0 0.0
    %336 = vmatprep.subr.mxu0 0.0
    %337 = vmatpush1.msra.mxu0 0.0
    %338 = vmatprep.subr.mxu0 0.0
    %339 = vmatpush1.msra.mxu0 0.0
    %340 = vmatprep.subr.mxu0 0.0
    %341 = vmatpush1.msra.mxu0 0.0
    %342 = vmatprep.subr.mxu0 0.0
    %343 = vmatpush1.msra.mxu0 0.0
    %344 = vmatprep.subr.mxu0 0.0
    %345 = vmatpush1.msra.mxu0 0.0
    %346 = vmatprep.subr.mxu0 0.0
    %347 = vmatpush1.msra.mxu0 0.0
    %348 = vmatprep.mubr.f32.mxu0 0.0
    %349 = vmatmul.mubr.f32.gmra.mrb[0].mxu0 %v59
    %v350 = vpop.f32.mrb[0].mxu0
    %v351 = vadd.f32 0.0, %v350
    %v352 = vpop.f32.mrb[0].mxu0
    %353 = vmatprep.mubr.f32.mxu0 0.0
    %354 = vmatmul.mubr.f32.gmra.mrb[0].mxu0 %v60
    %v355 = vpop.f32.mrb[0].mxu0
    %v356 = vadd.f32 0.0, %v355
    %v357 = vpop.f32.mrb[0].mxu0
    %358 = vmatprep.mubr.f32.mxu0 0.0
    %359 = vmatmul.mubr.f32.gmra.mrb[0].mxu0 %v61
    %v360 = vpop.f32.mrb[0].mxu0
    %v361 = vadd.f32 0.0, %v360
    %v362 = vpop.f32.mrb[0].mxu0
    %363 = vmatprep.mubr.f32.mxu0 0.0
    %364 = vmatmul.mubr.f32.gmra.mrb[0].mxu0 %v62
    %v365 = vpop.f32.mrb[0].mxu0
    %v366 = vadd.f32 0.0, %v365
    %v367 = vpop.f32.mrb[0].mxu0
    %368 = vmatprep.mubr.f32.mxu0 0.0
    %369 = vmatmul.mubr.f32.gmra.mrb[0].mxu0 %v63
    %v370 = vpop.f32.mrb[0].mxu0
    %v371 = vadd.f32 0.0, %v370
    %v372 = vpop.f32.mrb[0].mxu0
    %373 = vmatprep.mubr.f32.mxu0 0.0
    %374 = vmatmul.mubr.f32.gmra.mrb[0].mxu0 %v64
    %v375 = vpop.f32.mrb[0].mxu0
    %v376 = vadd.f32 0.0, %v375
    %v377 = vpop.f32.mrb[0].mxu0
    %378 = vmatprep.mubr.f32.mxu0 0.0
    %379 = vmatmul.mubr.f32.gmra.mrb[0].mxu0 %v65
    %v380 = vpop.f32.mrb[0].mxu0
    %v381 = vadd.f32 0.0, %v380
    %v382 = vpop.f32.mrb[0].mxu0
    %383 = vmatprep.mubr.f32.mxu0 0.0
    %384 = vmatmul.mubr.f32.gmra.mrb[0].mxu0 %v66
    %v385 = vpop.f32.mrb[0].mxu0
    %v386 = vadd.f32 0.0, %v385
    %v387 = vpop.f32.mrb[0].mxu0
    %388 = vmatprep.mubr.f32.mxu0 0.0
    %389 = vmatmul.mubr.f32.gmra.mrb[0].mxu0 %v67
    %v390 = vpop.f32.mrb[0].mxu0
    %v391 = vadd.f32 0.0, %v390
    %v392 = vpop.f32.mrb[0].mxu0
    %393 = vmatprep.mubr.f32.mxu0 0.0
    %394 = vmatmul.mubr.f32.gmra.mrb[0].mxu0 %v68
    %v395 = vpop.f32.mrb[0].mxu0
    %v396 = vadd.f32 0.0, %v395
    %v397 = vpop.f32.mrb[0].mxu0
    %398 = vmatprep.mubr.f32.mxu0 0.0
    %399 = vmatmul.mubr.f32.gmra.mrb[0].mxu0 %v69
    %v400 = vpop.f32.mrb[0].mxu0
    %v401 = vadd.f32 0.0, %v400
    %v402 = vpop.f32.mrb[0].mxu0
    %403 = vmatprep.mubr.f32.mxu0 0.0
    %404 = vmatmul.mubr.f32.gmra.mrb[0].mxu0 %v70
    %v405 = vpop.f32.mrb[0].mxu0
    %v406 = vadd.f32 0.0, %v405
    %v407 = vpop.f32.mrb[0].mxu0
    %408 = vmatprep.mubr.f32.mxu0 0.0
    %409 = vmatmul.mubr.f32.gmra.mrb[0].mxu0 %v71
    %v410 = vpop.f32.mrb[0].mxu0
    %v411 = vadd.f32 0.0, %v410
    %v412 = vpop.f32.mrb[0].mxu0
    %413 = vmatprep.mubr.f32.mxu0 0.0
    %414 = vmatmul.mubr.f32.gmra.mrb[0].mxu0 %v72
    %v415 = vpop.f32.mrb[0].mxu0
    %v416 = vadd.f32 0.0, %v415
    %v417 = vpop.f32.mrb[0].mxu0
    %418 = vmatprep.mubr.f32.mxu0 0.0
    %419 = vmatmul.mubr.f32.gmra.mrb[0].mxu0 %v73
    %v420 = vpop.f32.mrb[0].mxu0
    %v421 = vadd.f32 0.0, %v420
    %v422 = vpop.f32.mrb[0].mxu0
    %423 = vmatprep.mubr.f32.mxu0 0.0
    %424 = vmatmul.mubr.f32.gmra.mrb[0].mxu0 %v74
    %v425 = vpop.f32.mrb[0].mxu0
    %v426 = vadd.f32 0.0, %v425
    %v427 = vpop.f32.mrb[0].mxu0
    %428 = vdwg.mxu0
    %v429 = vpack.c.bf16 %v196, %v190
    %v430 = vpack.c.bf16 %v198, %v192
    %v431 = vpack.c.bf16 %v356, %v351
    %v432 = vpack.c.bf16 %v208, %v202
    %v433 = vpack.c.bf16 %v210, %v204
    %v434 = vpack.c.bf16 %v366, %v361
    %v435 = vpack.c.bf16 %v220, %v214
    %v436 = vpack.c.bf16 %v222, %v216
    %v437 = vpack.c.bf16 %v376, %v371
    %v438 = vpack.c.bf16 %v232, %v226
    %v439 = vpack.c.bf16 %v234, %v228
    %v440 = vpack.c.bf16 %v386, %v381
    %v441 = vpack.c.bf16 %v244, %v238
    %v442 = vpack.c.bf16 %v246, %v240
    %v443 = vpack.c.bf16 %v396, %v391
    %v444 = vpack.c.bf16 %v256, %v250
    %v445 = vpack.c.bf16 %v258, %v252
    %v446 = vpack.c.bf16 %v406, %v401
    %v447 = vpack.c.bf16 %v268, %v262
    %v448 = vpack.c.bf16 %v270, %v264
    %v449 = vpack.c.bf16 %v416, %v411
    %v450 = vpack.c.bf16 %v280, %v274
    %v451 = vpack.c.bf16 %v282, %v276
    %v452 = vpack.c.bf16 %v426, %v421
    %v477 = vunpack.c.l.b16 %v429
    %v478 = vunpack.c.l.b16 %v430
    %v479 = vunpack.c.l.b16 %v431
    %v480 = vunpack.c.h.b16 %v429
    %v481 = vunpack.c.h.b16 %v430
    %v482 = vunpack.c.h.b16 %v431
    %v483 = vunpack.c.l.b16 %v432
    %v484 = vunpack.c.l.b16 %v433
    %v485 = vunpack.c.l.b16 %v434
    %v486 = vunpack.c.h.b16 %v432
    %v487 = vunpack.c.h.b16 %v433
    %v488 = vunpack.c.h.b16 %v434
    %v489 = vunpack.c.l.b16 %v435
    %v490 = vunpack.c.l.b16 %v436
    %v491 = vunpack.c.l.b16 %v437
    %v492 = vunpack.c.h.b16 %v435
    %v493 = vunpack.c.h.b16 %v436
    %v494 = vunpack.c.h.b16 %v437
    %v495 = vunpack.c.l.b16 %v438
    %v496 = vunpack.c.l.b16 %v439
    %v497 = vunpack.c.l.b16 %v440
    %v498 = vunpack.c.h.b16 %v438
    %v499 = vunpack.c.h.b16 %v439
    %v500 = vunpack.c.h.b16 %v440
    %v501 = vunpack.c.l.b16 %v441
    %v502 = vunpack.c.l.b16 %v442
    %v503 = vunpack.c.l.b16 %v443
    %v504 = vunpack.c.h.b16 %v441
    %v505 = vunpack.c.h.b16 %v442
    %v506 = vunpack.c.h.b16 %v443
    %v507 = vunpack.c.l.b16 %v444
    %v508 = vunpack.c.l.b16 %v445
    %v509 = vunpack.c.l.b16 %v446
    %v510 = vunpack.c.h.b16 %v444
    %v511 = vunpack.c.h.b16 %v445
    %v512 = vunpack.c.h.b16 %v446
    %v513 = vunpack.c.l.b16 %v447
    %v514 = vunpack.c.l.b16 %v448
    %v515 = vunpack.c.l.b16 %v449
    %v516 = vunpack.c.h.b16 %v447
    %v517 = vunpack.c.h.b16 %v448
    %v518 = vunpack.c.h.b16 %v449
    %v519 = vunpack.c.l.b16 %v450
    %v520 = vunpack.c.l.b16 %v451
    %v521 = vunpack.c.l.b16 %v452
    %v522 = vunpack.c.h.b16 %v450
    %v523 = vunpack.c.h.b16 %v451
    %v524 = vunpack.c.h.b16 %v452
    %v525 = vpack.c.b16 %v478, %v477
    %v526 = vpack.c.b16 %v479, %v479
    %v527 = vpack.c.b16 %v481, %v480
    %v528 = vpack.c.b16 %v482, %v482
    %v529 = vpack.c.b16 %v484, %v483
    %v530 = vpack.c.b16 %v485, %v485
    %v531 = vpack.c.b16 %v487, %v486
    %v532 = vpack.c.b16 %v488, %v488
    %v533 = vpack.c.b16 %v490, %v489
    %v534 = vpack.c.b16 %v491, %v491
    %v535 = vpack.c.b16 %v493, %v492
    %v536 = vpack.c.b16 %v494, %v494
    %v537 = vpack.c.b16 %v496, %v495
    %v538 = vpack.c.b16 %v497, %v497
    %v539 = vpack.c.b16 %v499, %v498
    %v540 = vpack.c.b16 %v500, %v500
    %v541 = vpack.c.b16 %v502, %v501
    %v542 = vpack.c.b16 %v503, %v503
    %v543 = vpack.c.b16 %v505, %v504
    %v544 = vpack.c.b16 %v506, %v506
    %v545 = vpack.c.b16 %v508, %v507
    %v546 = vpack.c.b16 %v509, %v509
    %v547 = vpack.c.b16 %v511, %v510
    %v548 = vpack.c.b16 %v512, %v512
    %v549 = vpack.c.b16 %v514, %v513
    %v550 = vpack.c.b16 %v515, %v515
    %v551 = vpack.c.b16 %v517, %v516
    %v552 = vpack.c.b16 %v518, %v518
    %v553 = vpack.c.b16 %v520, %v519
    %v554 = vpack.c.b16 %v521, %v521
    %v555 = vpack.c.b16 %v523, %v522
    %v556 = vpack.c.b16 %v524, %v524
    %589 = vst [vmem:[#allocation8] sm:$0xff] %v525
    %590 = vst [vmem:[#allocation8 + $0x8] sm:$0xf] %v526
    %591 = vst [vmem:[#allocation8 + $0xc] sm:$0xff] %v527
    %592 = vst [vmem:[#allocation8 + $0x14] sm:$0xf] %v528
    %593 = vst [vmem:[#allocation8 + $0x18] sm:$0xff] %v529
    %594 = vst [vmem:[#allocation8 + $0x20] sm:$0xf] %v530
    %595 = vst [vmem:[#allocation8 + $0x24] sm:$0xff] %v531
    %596 = vst [vmem:[#allocation8 + $0x2c] sm:$0xf] %v532
    %597 = vst [vmem:[#allocation8 + $0x30] sm:$0xff] %v533
    %598 = vst [vmem:[#allocation8 + $0x38] sm:$0xf] %v534
    %599 = vst [vmem:[#allocation8 + $0x3c] sm:$0xff] %v535
    %600 = vst [vmem:[#allocation8 + $0x44] sm:$0xf] %v536
    %601 = vst [vmem:[#allocation8 + $0x48] sm:$0xff] %v537
    %602 = vst [vmem:[#allocation8 + $0x50] sm:$0xf] %v538
    %603 = vst [vmem:[#allocation8 + $0x54] sm:$0xff] %v539
    %604 = vst [vmem:[#allocation8 + $0x5c] sm:$0xf] %v540
    %605 = vst [vmem:[#allocation8 + $0x60] sm:$0xff] %v541
    %606 = vst [vmem:[#allocation8 + $0x68] sm:$0xf] %v542
    %607 = vst [vmem:[#allocation8 + $0x6c] sm:$0xff] %v543
    %608 = vst [vmem:[#allocation8 + $0x74] sm:$0xf] %v544
    %609 = vst [vmem:[#allocation8 + $0x78] sm:$0xff] %v545
    %610 = vst [vmem:[#allocation8 + $0x80] sm:$0xf] %v546
    %611 = vst [vmem:[#allocation8 + $0x84] sm:$0xff] %v547
    %612 = vst [vmem:[#allocation8 + $0x8c] sm:$0xf] %v548
    %613 = vst [vmem:[#allocation8 + $0x90] sm:$0xff] %v549
    %614 = vst [vmem:[#allocation8 + $0x98] sm:$0xf] %v550
    %615 = vst [vmem:[#allocation8 + $0x9c] sm:$0xff] %v551
    %616 = vst [vmem:[#allocation8 + $0xa4] sm:$0xf] %v552
    %617 = vst [vmem:[#allocation8 + $0xa8] sm:$0xff] %v553
    %618 = vst [vmem:[#allocation8 + $0xb0] sm:$0xf] %v554
    %619 = vst [vmem:[#allocation8 + $0xb4] sm:$0xff] %v555
    %620 = vst [vmem:[#allocation8 + $0xbc] sm:$0xf] %v556
    %v621 = vld [vmem:[#allocation7] sm:$0xff]
    %v622 = vld [vmem:[#allocation7 + $0x8] sm:$0xff]
    %v623 = vld [vmem:[#allocation7 + $0x10] sm:$0xff]
    %v624 = vld [vmem:[#allocation7 + $0x18] sm:$0xff]
    %v625 = vld [vmem:[#allocation7 + $0x20] sm:$0xff]
    %v626 = vld [vmem:[#allocation7 + $0x28] sm:$0xff]
    %v627 = vld [vmem:[#allocation7 + $0x30] sm:$0xff]
    %v628 = vld [vmem:[#allocation7 + $0x38] sm:$0xff]
    %v629 = vld [vmem:[#allocation7 + $0x40] sm:$0xff]
    %v630 = vld [vmem:[#allocation7 + $0x48] sm:$0xff]
    %v631 = vld [vmem:[#allocation7 + $0x50] sm:$0xff]
    %v632 = vld [vmem:[#allocation7 + $0x58] sm:$0xff]
    %v633 = vld [vmem:[#allocation7 + $0x60] sm:$0xff]
    %v634 = vld [vmem:[#allocation7 + $0x68] sm:$0xff]
    %v635 = vld [vmem:[#allocation7 + $0x70] sm:$0xff]
    %v636 = vld [vmem:[#allocation7 + $0x78] sm:$0xff]
    %637 = vmatprep.subr.mxu0 0.0
    %638 = vmatpush1.msra.mxu0 %v621
    %639 = vmatprep.subr.mxu0 0.0
    %640 = vmatpush1.msra.mxu0 %v622
    %641 = vmatprep.subr.mxu0 0.0
    %642 = vmatpush1.msra.mxu0 %v623
    %643 = vmatprep.subr.mxu0 0.0
    %644 = vmatpush1.msra.mxu0 %v624
    %645 = vmatprep.subr.mxu0 0.0
    %646 = vmatpush1.msra.mxu0 %v625
    %647 = vmatprep.subr.mxu0 0.0
    %648 = vmatpush1.msra.mxu0 %v626
    %649 = vmatprep.subr.mxu0 0.0
    %650 = vmatpush1.msra.mxu0 %v627
    %651 = vmatprep.subr.mxu0 0.0
    %652 = vmatpush1.msra.mxu0 %v628
    %653 = vmatprep.subr.mxu0 0.0
    %654 = vmatpush1.msra.mxu0 %v629
    %655 = vmatprep.subr.mxu0 0.0
    %656 = vmatpush1.msra.mxu0 %v630
    %657 = vmatprep.subr.mxu0 0.0
    %658 = vmatpush1.msra.mxu0 %v631
    %659 = vmatprep.subr.mxu0 0.0
    %660 = vmatpush1.msra.mxu0 %v632
    %661 = vmatprep.subr.mxu0 0.0
    %662 = vmatpush1.msra.mxu0 %v633
    %663 = vmatprep.subr.mxu0 0.0
    %664 = vmatpush1.msra.mxu0 %v634
    %665 = vmatprep.subr.mxu0 0.0
    %666 = vmatpush1.msra.mxu0 %v635
    %667 = vmatprep.subr.mxu0 0.0
    %668 = vmatpush1.msra.mxu0 %v636
    %669 = vmatprep.subr.mxu0 0.0
    %670 = vmatpush1.msra.mxu0 0.0
    %671 = vmatprep.subr.mxu0 0.0
    %672 = vmatpush1.msra.mxu0 0.0
    %673 = vmatprep.subr.mxu0 0.0
    %674 = vmatpush1.msra.mxu0 0.0
    %675 = vmatprep.subr.mxu0 0.0
    %676 = vmatpush1.msra.mxu0 0.0
    %677 = vmatprep.subr.mxu0 0.0
    %678 = vmatpush1.msra.mxu0 0.0
    %679 = vmatprep.subr.mxu0 0.0
    %680 = vmatpush1.msra.mxu0 0.0
    %681 = vmatprep.subr.mxu0 0.0
    %682 = vmatpush1.msra.mxu0 0.0
    %683 = vmatprep.subr.mxu0 0.0
    %684 = vmatpush1.msra.mxu0 0.0
    %685 = vmatprep.subr.mxu0 0.0
    %686 = vmatpush1.msra.mxu0 0.0
    %687 = vmatprep.subr.mxu0 0.0
    %688 = vmatpush1.msra.mxu0 0.0
    %689 = vmatprep.subr.mxu0 0.0
    %690 = vmatpush1.msra.mxu0 0.0
    %691 = vmatprep.subr.mxu0 0.0
    %692 = vmatpush1.msra.mxu0 0.0
    %693 = vmatprep.subr.mxu0 0.0
    %694 = vmatpush1.msra.mxu0 0.0
    %695 = vmatprep.subr.mxu0 0.0
    %696 = vmatpush1.msra.mxu0 0.0
    %697 = vmatprep.subr.mxu0 0.0
    %698 = vmatpush1.msra.mxu0 0.0
    %699 = vmatprep.subr.mxu0 0.0
    %700 = vmatpush1.msra.mxu0 0.0
    %701 = vmatprep.mubr.f32.mxu0 0.0
    %702 = vmatmul.mubr.f32.gmra.mrb[0].mxu0 %v59
    %v703 = vpop.f32.mrb[0].mxu0
    %v704 = vadd.f32 0.0, %v703
    %v705 = vpop.f32.mrb[0].mxu0
    %706 = vmatprep.mubr.f32.mxu0 0.0
    %707 = vmatmul.mubr.f32.gmra.mrb[0].mxu0 %v60
    %v708 = vpop.f32.mrb[0].mxu0
    %v709 = vadd.f32 0.0, %v708
    %v710 = vpop.f32.mrb[0].mxu0
    %711 = vmatprep.mubr.f32.mxu0 0.0
    %712 = vmatmul.mubr.f32.gmra.mrb[0].mxu0 %v61
    %v713 = vpop.f32.mrb[0].mxu0
    %v714 = vadd.f32 0.0, %v713
    %v715 = vpop.f32.mrb[0].mxu0
    %716 = vmatprep.mubr.f32.mxu0 0.0
    %717 = vmatmul.mubr.f32.gmra.mrb[0].mxu0 %v62
    %v718 = vpop.f32.mrb[0].mxu0
    %v719 = vadd.f32 0.0, %v718
    %v720 = vpop.f32.mrb[0].mxu0
    %721 = vmatprep.mubr.f32.mxu0 0.0
    %722 = vmatmul.mubr.f32.gmra.mrb[0].mxu0 %v63
    %v723 = vpop.f32.mrb[0].mxu0
    %v724 = vadd.f32 0.0, %v723
    %v725 = vpop.f32.mrb[0].mxu0
    %726 = vmatprep.mubr.f32.mxu0 0.0
    %727 = vmatmul.mubr.f32.gmra.mrb[0].mxu0 %v64
    %v728 = vpop.f32.mrb[0].mxu0
    %v729 = vadd.f32 0.0, %v728
    %v730 = vpop.f32.mrb[0].mxu0
    %731 = vmatprep.mubr.f32.mxu0 0.0
    %732 = vmatmul.mubr.f32.gmra.mrb[0].mxu0 %v65
    %v733 = vpop.f32.mrb[0].mxu0
    %v734 = vadd.f32 0.0, %v733
    %v735 = vpop.f32.mrb[0].mxu0
    %736 = vmatprep.mubr.f32.mxu0 0.0
    %737 = vmatmul.mubr.f32.gmra.mrb[0].mxu0 %v66
    %v738 = vpop.f32.mrb[0].mxu0
    %v739 = vadd.f32 0.0, %v738
    %v740 = vpop.f32.mrb[0].mxu0
    %741 = vmatprep.mubr.f32.mxu0 0.0
    %742 = vmatmul.mubr.f32.gmra.mrb[0].mxu0 %v67
    %v743 = vpop.f32.mrb[0].mxu0
    %v744 = vadd.f32 0.0, %v743
    %v745 = vpop.f32.mrb[0].mxu0
    %746 = vmatprep.mubr.f32.mxu0 0.0
    %747 = vmatmul.mubr.f32.gmra.mrb[0].mxu0 %v68
    %v748 = vpop.f32.mrb[0].mxu0
    %v749 = vadd.f32 0.0, %v748
    %v750 = vpop.f32.mrb[0].mxu0
    %751 = vmatprep.mubr.f32.mxu0 0.0
    %752 = vmatmul.mubr.f32.gmra.mrb[0].mxu0 %v69
    %v753 = vpop.f32.mrb[0].mxu0
    %v754 = vadd.f32 0.0, %v753
    %v755 = vpop.f32.mrb[0].mxu0
    %756 = vmatprep.mubr.f32.mxu0 0.0
    %757 = vmatmul.mubr.f32.gmra.mrb[0].mxu0 %v70
    %v758 = vpop.f32.mrb[0].mxu0
    %v759 = vadd.f32 0.0, %v758
    %v760 = vpop.f32.mrb[0].mxu0
    %761 = vmatprep.mubr.f32.mxu0 0.0
    %762 = vmatmul.mubr.f32.gmra.mrb[0].mxu0 %v71
    %v763 = vpop.f32.mrb[0].mxu0
    %v764 = vadd.f32 0.0, %v763
    %v765 = vpop.f32.mrb[0].mxu0
    %766 = vmatprep.mubr.f32.mxu0 0.0
    %767 = vmatmul.mubr.f32.gmra.mrb[0].mxu0 %v72
    %v768 = vpop.f32.mrb[0].mxu0
    %v769 = vadd.f32 0.0, %v768
    %v770 = vpop.f32.mrb[0].mxu0
    %771 = vmatprep.mubr.f32.mxu0 0.0
    %772 = vmatmul.mubr.f32.gmra.mrb[0].mxu0 %v73
    %v773 = vpop.f32.mrb[0].mxu0
    %v774 = vadd.f32 0.0, %v773
    %v775 = vpop.f32.mrb[0].mxu0
    %776 = vmatprep.mubr.f32.mxu0 0.0
    %777 = vmatmul.mubr.f32.gmra.mrb[0].mxu0 %v74
    %v778 = vpop.f32.mrb[0].mxu0
    %v779 = vadd.f32 0.0, %v778
    %v780 = vpop.f32.mrb[0].mxu0
    %781 = vdwg.mxu0
    %782 = vst [vmem:[#allocation9] sm:$0xff] %v704
    %783 = vst [vmem:[#allocation9 + $0x8] sm:$0xff] %v709
    %784 = vst [vmem:[#allocation9 + $0x10] sm:$0xff] %v714
    %785 = vst [vmem:[#allocation9 + $0x18] sm:$0xff] %v719
    %786 = vst [vmem:[#allocation9 + $0x20] sm:$0xff] %v724
    %787 = vst [vmem:[#allocation9 + $0x28] sm:$0xff] %v729
    %788 = vst [vmem:[#allocation9 + $0x30] sm:$0xff] %v734
    %789 = vst [vmem:[#allocation9 + $0x38] sm:$0xff] %v739
    %790 = vst [vmem:[#allocation9 + $0x40] sm:$0xff] %v744
    %791 = vst [vmem:[#allocation9 + $0x48] sm:$0xff] %v749
    %792 = vst [vmem:[#allocation9 + $0x50] sm:$0xff] %v754
    %793 = vst [vmem:[#allocation9 + $0x58] sm:$0xff] %v759
    %794 = vst [vmem:[#allocation9 + $0x60] sm:$0xff] %v764
    %795 = vst [vmem:[#allocation9 + $0x68] sm:$0xff] %v769
    %796 = vst [vmem:[#allocation9 + $0x70] sm:$0xff] %v774
    %797 = vst [vmem:[#allocation9 + $0x78] sm:$0xff] %v779
    // Predicated region
    $region26: #{tpu_custom_call.1} parent=1 // pred_check
      _
    $region27: #{tpu_custom_call.1} parent=1 // pred_check_branch
      %799 = sbr.rel (0) target = $region29
    $region28: #{tpu_custom_call.1} parent=1 // pred_region
      %s801 = ssub.s32 3072, 3072
      %802 = vsyncadd [#allocation4], %s801
      %s803 = sshll.u32 [#allocation8], 4
      %s804 = int_to_ptr.vmem [resolvable:$true] %s803
      %809 = dma.vmem_to_hbm [thread:$0]  %s804, 3072, %s3, [#allocation4], 192, 192, 12
    $region29: #{tpu_custom_call.1} parent=1 // pred_fallthru
      _
    // Predicated region
    $region30: #{tpu_custom_call.1} parent=1 // pred_check
      _
    $region31: #{tpu_custom_call.1} parent=1 // pred_check_branch
      %811 = sbr.rel (0) target = $region33
    $region32: #{tpu_custom_call.1} parent=1 // pred_region
      %s813 = ssub.s32 2048, 2048
      %814 = vsyncadd [#allocation10], %s813
      %s815 = sshll.u32 [#allocation9], 4
      %s816 = int_to_ptr.vmem [resolvable:$true] %s815
      %821 = dma.vmem_to_hbm [thread:$0]  %s816, 2048, %s4, [#allocation10], 128, 128, 8
    $region33: #{tpu_custom_call.1} parent=1 // pred_fallthru
      _
    // Predicated region
    $region34: #{tpu_custom_call.1} parent=1 // pred_check
      _
    $region35: #{tpu_custom_call.1} parent=1 // pred_check_branch
      %823 = sbr.rel (0) target = $region37
    $region36: #{tpu_custom_call.1} parent=1 // pred_region
      %824 = dma.done [#allocation4], 3072
    $region37: #{tpu_custom_call.1} parent=1 // pred_fallthru
      _
    // Predicated region
    $region38: #{tpu_custom_call.1} parent=1 // pred_check
      _
    $region39: #{tpu_custom_call.1} parent=1 // pred_check_branch
      %826 = sbr.rel (0) target = $region41
    $region40: #{tpu_custom_call.1} parent=1 // pred_region
      %827 = dma.done [#allocation10], 2048
    $region41: #{tpu_custom_call.1} parent=1 // pred_fallthru
      _
    %828 = vsyncpa [#allocation3], 1
    %829 = vsyncpa [#allocation6], 1
    %830 = vsyncpa [#allocation4], 1
    %831 = vsyncpa [#allocation10], 1

</llo_original>
